<compile_context>
chip_gen: v6e
topology: v6e:2x2x1
jax: 0.10.0
libtpu: 0.0.40
codegen_flags: <defaults>
</compile_context>

<pallas_src>
import jax
import jax.numpy as jnp
from jax.experimental import pallas as pl
from jax.experimental.pallas import tpu as pltpu

LANE = 128         # pad 10-wide logits up to one full lane width
IN_FEATS = 28 * 28


def mlp_kernel(x_ref, w1_ref, b1_ref, w2_ref, b2_ref, w3_ref, b3_ref, o_ref):
    # One batch tile: 3 MXU matmuls (bf16 inputs, f32 accumulation); bias-add
    # and ReLU kept in f32 (v5e VPU has no bf16).
    x = x_ref[...].astype(jnp.bfloat16)                           # in-kernel cast
    h1 = jnp.dot(x, w1_ref[...], preferred_element_type=jnp.float32)
    h1 = jnp.maximum(h1 + b1_ref[...], 0.0)                       # (Bt, 128) f32
    h2 = jnp.dot(h1.astype(jnp.bfloat16), w2_ref[...],
                 preferred_element_type=jnp.float32)
    h2 = jnp.maximum(h2 + b2_ref[...], 0.0)                       # (Bt, 64) f32
    # Output columns 10..127 are exact zeros in w3/b3, so this is a full,
    # unmasked lane-dense store.
    out = jnp.dot(h2.astype(jnp.bfloat16), w3_ref[...],
                  preferred_element_type=jnp.float32)
    o_ref[...] = out + b3_ref[...]                                # (Bt, 128) f32


def _round_up(v, m):
    return ((v + m - 1) // m) * m


def prepare_params(params):
    """One-time parameter prep (bf16 weights, lane-padded final layer)."""
    w1, b1, w2, b2, w3, b3 = params
    w1_bf = w1.astype(jnp.bfloat16)                        # (784, 128)
    w2_bf = w2.astype(jnp.bfloat16)                        # (128, 64)
    w3_p = jnp.zeros((w3.shape[0], LANE), jnp.bfloat16).at[:, :10].set(
        w3.astype(jnp.bfloat16))                           # (64, 128)
    b1_r = b1.reshape(1, -1).astype(jnp.float32)           # (1, 128)
    b2_r = b2.reshape(1, -1).astype(jnp.float32)           # (1, 64)
    b3_p = jnp.zeros((1, LANE), jnp.float32).at[:, :10].set(
        b3.reshape(1, -1))                                 # (1, 128)
    return (w1_bf, b1_r, w2_bf, b2_r, w3_p, b3_p)


def _pallas_forward(x2d, prep, *, bt, n_blocks):
    """Run the MLP on the first n_blocks*bt rows of x2d (f32, (rows, 784))."""
    w1_bf, b1, w2_bf, b2, w3_p, b3_p = prep
    rows = n_blocks * bt
    const2d = lambda i: (0, 0)  # weights/biases: same block -> VMEM-resident

    flops = 2 * rows * (IN_FEATS * 128 + 128 * 64 + 64 * LANE)
    weight_bytes = (w1_bf.size * 2 + w2_bf.size * 2 + w3_p.size * 2
                    + (b1.size + b2.size + b3_p.size) * 4)
    bytes_accessed = rows * IN_FEATS * 4 + weight_bytes + rows * LANE * 4

    # Double-buffered VMEM footprint; only override the scoped limit if it
    # would not fit v5e's 16 MiB default (default block_b=1024 fits everywhere).
    vmem_need = (2 * bt * IN_FEATS * 4 + 2 * bt * LANE * 4
                 + 2 * weight_bytes + (2 << 20))
    vmem_limit = vmem_need if vmem_need > (16 << 20) else None

    # TODO(synk): on v7x, verify the "parallel" batch axis actually shards
    # across the two TensorCores; switch to pltpu.CORE_PARALLEL if a profile
    # shows one TC idle.
    return pl.pallas_call(
        mlp_kernel,
        out_shape=jax.ShapeDtypeStruct((rows, LANE), jnp.float32),
        grid_spec=pltpu.PrefetchScalarGridSpec(
            num_scalar_prefetch=0,
            grid=(n_blocks,),
            in_specs=[
                pl.BlockSpec((bt, IN_FEATS), lambda i: (i, 0)),  # x tiles stream
                pl.BlockSpec(w1_bf.shape, const2d),
                pl.BlockSpec(b1.shape, const2d),
                pl.BlockSpec(w2_bf.shape, const2d),
                pl.BlockSpec(b2.shape, const2d),
                pl.BlockSpec(w3_p.shape, const2d),
                pl.BlockSpec(b3_p.shape, const2d),
            ],
            out_specs=pl.BlockSpec((bt, LANE), lambda i: (i, 0)),
        ),
        compiler_params=pltpu.CompilerParams(
            dimension_semantics=("parallel",),
            vmem_limit_bytes=vmem_limit),
        cost_estimate=pl.CostEstimate(
            flops=flops, transcendentals=0, bytes_accessed=bytes_accessed),
    )(x2d, w1_bf, b1, w2_bf, b2, w3_p, b3_p)


def mnist_nn_forward(x_nchw, prepared_params, *, block_b=1024):
    """x_nchw: (B, 1, 28, 28) float32. Returns logits (B, 10) float32."""
    B = x_nchw.shape[0]
    x = x_nchw.reshape(B, IN_FEATS).astype(jnp.float32)  # == torch view(-1, 784)

    # Tile: at most block_b rows, at least 16, multiple of 16, and ~B/2 for
    # small batches so the grid has >=2 steps (keeps both v7x TCs busy).
    bt = min(block_b, max(16, _round_up(pl.cdiv(B, 2), 16)))
    n_full = B // bt
    rem = B - n_full * bt

    pieces = []
    if n_full > 0:
        # Pass the original x buffer; the grid only visits the n_full fully
        # populated blocks, so no wrapper-side pad/copy of the big part.
        out_main = _pallas_forward(x, prep=prepared_params, bt=bt,
                                   n_blocks=n_full)
        pieces.append(out_main[:, :10])
    if rem > 0:
        bt_tail = max(16, _round_up(rem, 16))
        x_tail = x[n_full * bt:]
        if bt_tail != rem:
            x_tail = jnp.pad(x_tail, ((0, bt_tail - rem), (0, 0)))  # O(tile) pad
        out_tail = _pallas_forward(x_tail, prep=prepared_params, bt=bt_tail,
                                   n_blocks=1)
        pieces.append(out_tail[:rem, :10])

    return pieces[0] if len(pieces) == 1 else jnp.concatenate(pieces, axis=0)


def init_params(key):
    # Deterministic synthetic init matching nn.Linear shapes (weights stored
    # transposed as (in, out) for the x @ W convention; biases 1-D like torch).
    ks = jax.random.split(key, 6)

    def lin(kw, kb, fan_in, fan_out):
        bound = 1.0 / jnp.sqrt(fan_in)
        w = jax.random.uniform(kw, (fan_in, fan_out), jnp.float32, -bound, bound)
        b = jax.random.uniform(kb, (fan_out,), jnp.float32, -bound, bound)
        return w, b

    w1, b1 = lin(ks[0], ks[1], IN_FEATS, 128)
    w2, b2 = lin(ks[2], ks[3], 128, 64)
    w3, b3 = lin(ks[4], ks[5], 64, 10)
    return (w1, b1, w2, b2, w3, b3)


def reference_forward_f32(x_nchw, params):
    # Pure-f32 reference (PyTorch semantics).
    w1, b1, w2, b2, w3, b3 = params
    x = x_nchw.reshape(x_nchw.shape[0], -1).astype(jnp.float32)
    h1 = jnp.maximum(x @ w1 + b1, 0.0)
    h2 = jnp.maximum(h1 @ w2 + b2, 0.0)
    return h2 @ w3 + b3


def reference_forward_bf16(x_nchw, params):
    # Same bf16-input / f32-accumulate matmul math as the kernel.
    w1, b1, w2, b2, w3, b3 = params
    x = x_nchw.reshape(x_nchw.shape[0], -1).astype(jnp.bfloat16)
    h1 = jnp.dot(x, w1.astype(jnp.bfloat16),
                 preferred_element_type=jnp.float32) + b1
    h1 = jnp.maximum(h1, 0.0)
    h2 = jnp.dot(h1.astype(jnp.bfloat16), w2.astype(jnp.bfloat16),
                 preferred_element_type=jnp.float32) + b2
    h2 = jnp.maximum(h2, 0.0)
    return jnp.dot(h2.astype(jnp.bfloat16), w3.astype(jnp.bfloat16),
                   preferred_element_type=jnp.float32) + b3


if __name__ == "__main__":
    key = jax.random.PRNGKey(0)
    k_x, k_p = jax.random.split(key)
    params = init_params(k_p)
    prep = prepare_params(params)   # one-time weight prep (hoisted)

    # Small MNIST-style batch: bt=16, grid=(2,), single call, no padding.
    B = 32
    x = jax.random.normal(k_x, (B, 1, 28, 28), jnp.float32)

    out = jax.block_until_ready(mnist_nn_forward(x, prep))
    ref_bf16 = reference_forward_bf16(x, params)
    ref_f32 = reference_forward_f32(x, params)

    assert out.shape == (B, 10), out.shape
    # Tight check vs. a reference doing the same bf16-input / f32-accum math.
    assert jnp.allclose(out, ref_bf16, atol=2e-3, rtol=2e-3), "mismatch vs bf16 reference"
    # Loose check vs. the pure-f32 PyTorch-semantics reference.
    assert jnp.allclose(out, ref_f32, atol=5e-2, rtol=5e-2), "mismatch vs f32 reference"

    # Ragged batch exercising the main-blocks + padded-tail split
    # (B=40 -> bt=32: 1 full block + 8-row tail padded to 16).
    B2 = 40
    x2 = jax.random.normal(jax.random.PRNGKey(1), (B2, 1, 28, 28), jnp.float32)
    out2 = jax.block_until_ready(mnist_nn_forward(x2, prep))
    assert out2.shape == (B2, 10)
    assert jnp.allclose(out2, reference_forward_bf16(x2, params),
                        atol=2e-3, rtol=2e-3), "ragged split mismatch"

    # Tiny batch (B < 16): tail-only path with a single padded 16-row tile.
    B3 = 5
    x3 = jax.random.normal(jax.random.PRNGKey(2), (B3, 1, 28, 28), jnp.float32)
    out3 = jax.block_until_ready(mnist_nn_forward(x3, prep))
    assert out3.shape == (B3, 10)
    assert jnp.allclose(out3, reference_forward_bf16(x3, params),
                        atol=2e-3, rtol=2e-3), "tiny batch mismatch"

    # Different tile size must give identical results (single-tile vs 2-tile).
    out_big_tile = jax.block_until_ready(mnist_nn_forward(x, prep, block_b=16))
    assert jnp.allclose(out, out_big_tile, atol=1e-5, rtol=1e-5), "tile-size mismatch"

    print("KERNEL_OK")
</pallas_src>

<mosaic_0001>
module attributes {stable_mosaic.version = 11 : i64} {
  func.func @mlp_kernel(%arg0: i32, %arg1: memref<16x784xf32, #tpu.memory_space<vmem>>, %arg2: memref<784x128xbf16, #tpu.memory_space<vmem>>, %arg3: memref<1x128xf32, #tpu.memory_space<vmem>>, %arg4: memref<128x64xbf16, #tpu.memory_space<vmem>>, %arg5: memref<1x64xf32, #tpu.memory_space<vmem>>, %arg6: memref<64x128xbf16, #tpu.memory_space<vmem>>, %arg7: memref<1x128xf32, #tpu.memory_space<vmem>>, %arg8: memref<16x128xf32, #tpu.memory_space<vmem>>) attributes {dimension_semantics = [#tpu.dimension_semantics<parallel>], iteration_bounds = array<i64: 2>, scalar_prefetch = 0 : i64, scratch_operands = 0 : i64, tpu.core_type = #tpu.core_type<tc>, window_params = [{transform_indices = @transform_0, window_bounds = array<i64: 16, 784>}, {pipeline_mode = #tpu.pipeline_mode<synchronous>, transform_indices = @transform_1, window_bounds = array<i64: 784, 128>}, {pipeline_mode = #tpu.pipeline_mode<synchronous>, transform_indices = @transform_2, window_bounds = array<i64: 1, 128>}, {pipeline_mode = #tpu.pipeline_mode<synchronous>, transform_indices = @transform_3, window_bounds = array<i64: 128, 64>}, {pipeline_mode = #tpu.pipeline_mode<synchronous>, transform_indices = @transform_4, window_bounds = array<i64: 1, 64>}, {pipeline_mode = #tpu.pipeline_mode<synchronous>, transform_indices = @transform_5, window_bounds = array<i64: 64, 128>}, {pipeline_mode = #tpu.pipeline_mode<synchronous>, transform_indices = @transform_6, window_bounds = array<i64: 1, 128>}, {transform_indices = @transform_7, window_bounds = array<i64: 16, 128>}]} {
    %c0 = arith.constant 0 : index
    %c0_0 = arith.constant 0 : index
    %0 = vector.load %arg1[%c0, %c0_0] : memref<16x784xf32, #tpu.memory_space<vmem>>, vector<16x784xf32>
    %1 = arith.truncf %0 : vector<16x784xf32> to vector<16x784xbf16>
    %c0_1 = arith.constant 0 : index
    %c0_2 = arith.constant 0 : index
    %2 = vector.load %arg2[%c0_1, %c0_2] : memref<784x128xbf16, #tpu.memory_space<vmem>>, vector<784x128xbf16>
    %cst = arith.constant dense<0.000000e+00> : vector<16x128xf32>
    %3 = tpu.matmul %1, %2, %cst {dimension_numbers = #tpu.dot_dimension_numbers<[1], [0], [0], [1], [0, 0, 1, 1], [], []>} : vector<16x784xbf16>, vector<784x128xbf16>, vector<16x128xf32> -> vector<16x128xf32>
    %c0_3 = arith.constant 0 : index
    %c0_4 = arith.constant 0 : index
    %4 = vector.load %arg3[%c0_3, %c0_4] : memref<1x128xf32, #tpu.memory_space<vmem>>, vector<1x128xf32>
    %5 = vector.broadcast %4 : vector<1x128xf32> to vector<16x128xf32>
    %6 = arith.addf %3, %5 : vector<16x128xf32>
    %cst_5 = arith.constant 0.000000e+00 : f32
    %7 = vector.broadcast %cst_5 : f32 to vector<16x128xf32>
    %8 = arith.maximumf %6, %7 : vector<16x128xf32>
    %9 = arith.truncf %8 : vector<16x128xf32> to vector<16x128xbf16>
    %c0_6 = arith.constant 0 : index
    %c0_7 = arith.constant 0 : index
    %10 = vector.load %arg4[%c0_6, %c0_7] : memref<128x64xbf16, #tpu.memory_space<vmem>>, vector<128x64xbf16>
    %cst_8 = arith.constant dense<0.000000e+00> : vector<16x64xf32>
    %11 = tpu.matmul %9, %10, %cst_8 {dimension_numbers = #tpu.dot_dimension_numbers<[1], [0], [0], [1], [0, 0, 1, 1], [], []>} : vector<16x128xbf16>, vector<128x64xbf16>, vector<16x64xf32> -> vector<16x64xf32>
    %c0_9 = arith.constant 0 : index
    %c0_10 = arith.constant 0 : index
    %12 = vector.load %arg5[%c0_9, %c0_10] : memref<1x64xf32, #tpu.memory_space<vmem>>, vector<1x64xf32>
    %13 = vector.broadcast %12 : vector<1x64xf32> to vector<16x64xf32>
    %14 = arith.addf %11, %13 : vector<16x64xf32>
    %cst_11 = arith.constant 0.000000e+00 : f32
    %15 = vector.broadcast %cst_11 : f32 to vector<16x64xf32>
    %16 = arith.maximumf %14, %15 : vector<16x64xf32>
    %17 = arith.truncf %16 : vector<16x64xf32> to vector<16x64xbf16>
    %c0_12 = arith.constant 0 : index
    %c0_13 = arith.constant 0 : index
    %18 = vector.load %arg6[%c0_12, %c0_13] : memref<64x128xbf16, #tpu.memory_space<vmem>>, vector<64x128xbf16>
    %cst_14 = arith.constant dense<0.000000e+00> : vector<16x128xf32>
    %19 = tpu.matmul %17, %18, %cst_14 {dimension_numbers = #tpu.dot_dimension_numbers<[1], [0], [0], [1], [0, 0, 1, 1], [], []>} : vector<16x64xbf16>, vector<64x128xbf16>, vector<16x128xf32> -> vector<16x128xf32>
    %c0_15 = arith.constant 0 : index
    %c0_16 = arith.constant 0 : index
    %20 = vector.load %arg7[%c0_15, %c0_16] : memref<1x128xf32, #tpu.memory_space<vmem>>, vector<1x128xf32>
    %21 = vector.broadcast %20 : vector<1x128xf32> to vector<16x128xf32>
    %22 = arith.addf %19, %21 : vector<16x128xf32>
    %c0_17 = arith.constant 0 : index
    %c0_18 = arith.constant 0 : index
    %23 = vector.load %arg8[%c0_17, %c0_18] : memref<16x128xf32, #tpu.memory_space<vmem>>, vector<16x128xf32>
    tpu.vector_store %arg8[%c0_17, %c0_18], %22 {strides = array<i32>} : memref<16x128xf32, #tpu.memory_space<vmem>>, vector<16x128xf32>,
    return
  }
  func.func @transform_0(%arg0: i32) -> (i32, i32) {
    %c0_i32 = arith.constant 0 : i32
    %c0_i32_0 = arith.constant 0 : i32
    return %arg0, %c0_i32 : i32, i32
  }
  func.func @transform_1(%arg0: i32) -> (i32, i32) {
    %c0_i32 = arith.constant 0 : i32
    %c0_i32_0 = arith.constant 0 : i32
    %c0_i32_1 = arith.constant 0 : i32
    return %c0_i32, %c0_i32_0 : i32, i32
  }
  func.func @transform_2(%arg0: i32) -> (i32, i32) {
    %c0_i32 = arith.constant 0 : i32
    %c0_i32_0 = arith.constant 0 : i32
    %c0_i32_1 = arith.constant 0 : i32
    return %c0_i32, %c0_i32_0 : i32, i32
  }
  func.func @transform_3(%arg0: i32) -> (i32, i32) {
    %c0_i32 = arith.constant 0 : i32
    %c0_i32_0 = arith.constant 0 : i32
    %c0_i32_1 = arith.constant 0 : i32
    return %c0_i32, %c0_i32_0 : i32, i32
  }
  func.func @transform_4(%arg0: i32) -> (i32, i32) {
    %c0_i32 = arith.constant 0 : i32
    %c0_i32_0 = arith.constant 0 : i32
    %c0_i32_1 = arith.constant 0 : i32
    return %c0_i32, %c0_i32_0 : i32, i32
  }
  func.func @transform_5(%arg0: i32) -> (i32, i32) {
    %c0_i32 = arith.constant 0 : i32
    %c0_i32_0 = arith.constant 0 : i32
    %c0_i32_1 = arith.constant 0 : i32
    return %c0_i32, %c0_i32_0 : i32, i32
  }
  func.func @transform_6(%arg0: i32) -> (i32, i32) {
    %c0_i32 = arith.constant 0 : i32
    %c0_i32_0 = arith.constant 0 : i32
    %c0_i32_1 = arith.constant 0 : i32
    return %c0_i32, %c0_i32_0 : i32, i32
  }
  func.func @transform_7(%arg0: i32) -> (i32, i32) {
    %c0_i32 = arith.constant 0 : i32
    %c0_i32_0 = arith.constant 0 : i32
    return %arg0, %c0_i32 : i32, i32
  }
}

</mosaic_0001>

<llo_original>
// kernel: tpu_custom_call.1
$region0: #{tpu_custom_call.1}
  #allocation0 [shape = 'u32[]', space=smem, size = 0x4, offset = 0x4, fixed_abs, tag = 'smem constant byte address 0x4 - core index']
  #allocation1 [shape = 'u32[144,128]{1,0:T(1,128)}', space=vmem, size = 0x12000, scoped, tag = 'internal scratch']
  %s0 = inlined_call_operand.hbm [shape: f32[32,784], index: 0, kind: input, shape index: {}]
  %s1 = inlined_call_operand.hbm [shape: bf16[784,128], index: 1, kind: input, shape index: {}]
  %s2 = inlined_call_operand.vmem [shape: f32[1,128], index: 2, kind: input, shape index: {}]
  %s3 = inlined_call_operand.vmem [shape: bf16[128,64], index: 3, kind: input, shape index: {}]
  %s4 = inlined_call_operand.vmem [shape: f32[1,64], index: 4, kind: input, shape index: {}]
  %s5 = inlined_call_operand.vmem [shape: bf16[64,128], index: 5, kind: input, shape index: {}]
  %s6 = inlined_call_operand.vmem [shape: f32[1,128], index: 6, kind: input, shape index: {}]
  %s7 = inlined_call_operand.hbm [shape: f32[32,128], index: 7, kind: output, shape index: {}]
  %s8 = sld [smem:[#allocation0]]
  $region69: #{tpu_custom_call.1} parent=0
    _
  %s10 = ssub.s32 1, %s8
  %s11 = scalar_select 0, %s10, %s8
  $region1: #{tpu_custom_call.1} parent=0
    #allocation2 [shape = 'u8[114688]{0}', space=vmem, size = 0x1c000, scoped, tag = 'input window, operand 0']
    #allocation3 [shape = 's32[2]{0}', space=sflag, size = 0x8, scoped, tag = 'scoped memory for tpu_custom_call.1']
    #allocation4 [shape = 's32[2]{0}', space=sflag, size = 0x8, scoped, tag = 'scoped memory for tpu_custom_call.1']
    #allocation5 [shape = 'u8[200704]{0}', space=vmem, size = 0x31000, scoped, tag = 'input window, operand 1, single buffered']
    #allocation6 [shape = 's32[1]{0}', space=sflag, size = 0x4, scoped, tag = 'scoped memory for tpu_custom_call.1']
    #allocation7 [shape = 'u8[16384]{0}', space=vmem, size = 0x4000, scoped, tag = 'output window, operand 0']
    %12 = vsyncpa [#allocation3], 0
    %s13 = scalar_lea.sflag [#allocation3], 1
    %14 = vsyncpa %s13, 0
    %15 = vsyncpa [#allocation6], 0
    %16 = vsyncpa [#allocation4], 0
    %s17 = scalar_lea.sflag [#allocation4], 1
    %18 = vsyncpa %s17, 0
    loop: start=0, step=1, limit=4
    $region2: #{tpu_custom_call.1} parent=1 // loop_pre_header
      _
    $region3: #{tpu_custom_call.1} parent=1 // loop_header
      %s20 = sphi 0, %s24
      %p21 = scmp.ge.s32.totalorder %s20, 4
      %s30 = sphi 0, %s32
      %s33 = sphi 0, %s30
      %s34 = sphi 0, %s33
      %s50 = sphi 0, %s34
      %s54 = sphi 0, %s54
      %s56 = sphi 0, %s54
      %s57 = sphi 0, %s56
      %s71 = sphi 0, %s57
      %s75 = sphi 0, %s75
      %s77 = sphi 0, %s75
      %s78 = sphi 0, %s77
      %s92 = sphi 0, %s78
      %s96 = sphi 0, %s96
      %s98 = sphi 0, %s96
      %s99 = sphi 0, %s98
      %s113 = sphi 0, %s99
      %s117 = sphi 0, %s117
      %s119 = sphi 0, %s117
      %s120 = sphi 0, %s119
      %s134 = sphi 0, %s120
      %s138 = sphi 0, %s138
      %s140 = sphi 0, %s138
      %s141 = sphi 0, %s140
      %s155 = sphi 0, %s141
      %s159 = sphi 0, %s159
      %s161 = sphi 0, %s159
      %s162 = sphi 0, %s161
      %s176 = sphi 0, %s162
      %s182 = sphi 0, %s184
      %s185 = sphi 0, %s182
      %s186 = sphi 0, %s185
      %s202 = sphi 0, %s186
    $region4: #{tpu_custom_call.1} parent=1 // loop_header_branch
      %23 = sbr.rel (%p21) target = $region8
    $region5: #{tpu_custom_call.1} parent=1 // loop_body
      %s25 = ssub.s32 %s20, 1
      %s26 = ssub.s32 %s20, 2
      %s27 = sadd.s32 %s20, 1
      %s28 = ssub.s32 %s20, %s27
      %p29 = scmp.eq.s32.totalorder %s28, 0
      %s31 = sadd.s32 %s30, 1
      %s32 = scalar_select %p29, %s30, %s31
      %p35 = pneg %p29
      %p36 = scmp.eq.s32.totalorder %s20, 1
      %p37 = por %p35, %p36
      %p38 = scmp.ne.s32.totalorder %s30, %s33
      %p39 = scmp.eq.s32.totalorder %s20, 0
      %p40 = por %p38, %p39
      %p41 = scmp.ne.s32.totalorder %s30, %s33
      %p42 = scmp.eq.s32.totalorder %s25, 1
      %p43 = por %p41, %p42
      %p44 = scmp.ne.s32.totalorder %s33, %s34
      %p45 = scmp.eq.s32.totalorder %s25, 0
      %p46 = por %p44, %p45
      %p47 = scmp.ne.s32.totalorder %s33, %s34
      %p48 = scmp.eq.s32.totalorder %s26, 1
      %p49 = por %p47, %p48
      %p51 = scmp.ne.s32.totalorder %s34, %s50
      %p52 = scmp.eq.s32.totalorder %s26, 0
      %p53 = por %p51, %p52
      %s55 = sadd.s32 %s54, 1
      %p58 = scmp.eq.s32.totalorder %s20, 1
      %p59 = scmp.ne.s32.totalorder %s54, %s56
      %p60 = scmp.eq.s32.totalorder %s20, 0
      %p61 = por %p59, %p60
      %p62 = scmp.ne.s32.totalorder %s54, %s56
      %p63 = scmp.eq.s32.totalorder %s25, 1
      %p64 = por %p62, %p63
      %p65 = scmp.ne.s32.totalorder %s56, %s57
      %p66 = scmp.eq.s32.totalorder %s25, 0
      %p67 = por %p65, %p66
      %p68 = scmp.ne.s32.totalorder %s56, %s57
      %p69 = scmp.eq.s32.totalorder %s26, 1
      %p70 = por %p68, %p69
      %p72 = scmp.ne.s32.totalorder %s57, %s71
      %p73 = scmp.eq.s32.totalorder %s26, 0
      %p74 = por %p72, %p73
      %s76 = sadd.s32 %s75, 1
      %p79 = scmp.eq.s32.totalorder %s20, 1
      %p80 = scmp.ne.s32.totalorder %s75, %s77
      %p81 = scmp.eq.s32.totalorder %s20, 0
      %p82 = por %p80, %p81
      %p83 = scmp.ne.s32.totalorder %s75, %s77
      %p84 = scmp.eq.s32.totalorder %s25, 1
      %p85 = por %p83, %p84
      %p86 = scmp.ne.s32.totalorder %s77, %s78
      %p87 = scmp.eq.s32.totalorder %s25, 0
      %p88 = por %p86, %p87
      %p89 = scmp.ne.s32.totalorder %s77, %s78
      %p90 = scmp.eq.s32.totalorder %s26, 1
      %p91 = por %p89, %p90
      %p93 = scmp.ne.s32.totalorder %s78, %s92
      %p94 = scmp.eq.s32.totalorder %s26, 0
      %p95 = por %p93, %p94
      %s97 = sadd.s32 %s96, 1
      %p100 = scmp.eq.s32.totalorder %s20, 1
      %p101 = scmp.ne.s32.totalorder %s96, %s98
      %p102 = scmp.eq.s32.totalorder %s20, 0
      %p103 = por %p101, %p102
      %p104 = scmp.ne.s32.totalorder %s96, %s98
      %p105 = scmp.eq.s32.totalorder %s25, 1
      %p106 = por %p104, %p105
      %p107 = scmp.ne.s32.totalorder %s98, %s99
      %p108 = scmp.eq.s32.totalorder %s25, 0
      %p109 = por %p107, %p108
      %p110 = scmp.ne.s32.totalorder %s98, %s99
      %p111 = scmp.eq.s32.totalorder %s26, 1
      %p112 = por %p110, %p111
      %p114 = scmp.ne.s32.totalorder %s99, %s113
      %p115 = scmp.eq.s32.totalorder %s26, 0
      %p116 = por %p114, %p115
      %s118 = sadd.s32 %s117, 1
      %p121 = scmp.eq.s32.totalorder %s20, 1
      %p122 = scmp.ne.s32.totalorder %s117, %s119
      %p123 = scmp.eq.s32.totalorder %s20, 0
      %p124 = por %p122, %p123
      %p125 = scmp.ne.s32.totalorder %s117, %s119
      %p126 = scmp.eq.s32.totalorder %s25, 1
      %p127 = por %p125, %p126
      %p128 = scmp.ne.s32.totalorder %s119, %s120
      %p129 = scmp.eq.s32.totalorder %s25, 0
      %p130 = por %p128, %p129
      %p131 = scmp.ne.s32.totalorder %s119, %s120
      %p132 = scmp.eq.s32.totalorder %s26, 1
      %p133 = por %p131, %p132
      %p135 = scmp.ne.s32.totalorder %s120, %s134
      %p136 = scmp.eq.s32.totalorder %s26, 0
      %p137 = por %p135, %p136
      %s139 = sadd.s32 %s138, 1
      %p142 = scmp.eq.s32.totalorder %s20, 1
      %p143 = scmp.ne.s32.totalorder %s138, %s140
      %p144 = scmp.eq.s32.totalorder %s20, 0
      %p145 = por %p143, %p144
      %p146 = scmp.ne.s32.totalorder %s138, %s140
      %p147 = scmp.eq.s32.totalorder %s25, 1
      %p148 = por %p146, %p147
      %p149 = scmp.ne.s32.totalorder %s140, %s141
      %p150 = scmp.eq.s32.totalorder %s25, 0
      %p151 = por %p149, %p150
      %p152 = scmp.ne.s32.totalorder %s140, %s141
      %p153 = scmp.eq.s32.totalorder %s26, 1
      %p154 = por %p152, %p153
      %p156 = scmp.ne.s32.totalorder %s141, %s155
      %p157 = scmp.eq.s32.totalorder %s26, 0
      %p158 = por %p156, %p157
      %s160 = sadd.s32 %s159, 1
      %p163 = scmp.eq.s32.totalorder %s20, 1
      %p164 = scmp.ne.s32.totalorder %s159, %s161
      %p165 = scmp.eq.s32.totalorder %s20, 0
      %p166 = por %p164, %p165
      %p167 = scmp.ne.s32.totalorder %s159, %s161
      %p168 = scmp.eq.s32.totalorder %s25, 1
      %p169 = por %p167, %p168
      %p170 = scmp.ne.s32.totalorder %s161, %s162
      %p171 = scmp.eq.s32.totalorder %s25, 0
      %p172 = por %p170, %p171
      %p173 = scmp.ne.s32.totalorder %s161, %s162
      %p174 = scmp.eq.s32.totalorder %s26, 1
      %p175 = por %p173, %p174
      %p177 = scmp.ne.s32.totalorder %s162, %s176
      %p178 = scmp.eq.s32.totalorder %s26, 0
      %p179 = por %p177, %p178
      %s180 = ssub.s32 %s20, %s27
      %p181 = scmp.eq.s32.totalorder %s180, 0
      %s183 = sadd.s32 %s182, 1
      %s184 = scalar_select %p181, %s182, %s183
      %p187 = pneg %p181
      %p188 = scmp.eq.s32.totalorder %s20, 1
      %p189 = por %p187, %p188
      %p190 = scmp.ne.s32.totalorder %s182, %s185
      %p191 = scmp.eq.s32.totalorder %s20, 0
      %p192 = por %p190, %p191
      %p193 = scmp.ne.s32.totalorder %s182, %s185
      %p194 = scmp.eq.s32.totalorder %s25, 1
      %p195 = por %p193, %p194
      %p196 = scmp.ne.s32.totalorder %s185, %s186
      %p197 = scmp.eq.s32.totalorder %s25, 0
      %p198 = por %p196, %p197
      %p199 = scmp.ne.s32.totalorder %s185, %s186
      %p200 = scmp.eq.s32.totalorder %s26, 1
      %p201 = por %p199, %p200
      %p203 = scmp.ne.s32.totalorder %s186, %s202
      %p204 = scmp.eq.s32.totalorder %s26, 0
      %p205 = por %p203, %p204
      %p206 = scmp.le.s32.totalorder 1, %s20
      %p207 = scmp.lt.s32.totalorder %s20, 3
      %p208 = pnand %p206, %p207
      %p209 = pneg %p208
      // Predicated region
      $region9: #{tpu_custom_call.1} parent=5 // pred_check
        _
      $region10: #{tpu_custom_call.1} parent=5 // pred_check_branch
        %211 = sbr.rel (%p208) target = $region12
      $region11: #{tpu_custom_call.1} parent=5 // pred_region
        %s212 = ssub.s32 %s20, 1
        // Predicated region
        $region13: #{tpu_custom_call.1} parent=11 // pred_check
          %p213 = pneg %p67
        $region14: #{tpu_custom_call.1} parent=11 // pred_check_branch
          %215 = sbr.rel (%p213) target = $region16
        $region15: #{tpu_custom_call.1} parent=11 // pred_region
          %s217 = ssub.s32 6272, 6272
          %218 = vsyncadd [#allocation6], %s217
          %s219 = sshll.u32 [#allocation5], 4
          %s220 = int_to_ptr.vmem [resolvable:$true] %s219
          %225 = dma.hbm_to_vmem [thread:$0]  %s1, 6272, %s220, [#allocation6], 64, 64, 4
        $region16: #{tpu_custom_call.1} parent=11 // pred_fallthru
          _
        // Predicated region
        $region17: #{tpu_custom_call.1} parent=11 // pred_check
          %p226 = pneg %p88
        $region18: #{tpu_custom_call.1} parent=11 // pred_check_branch
          %228 = sbr.rel (%p226) target = $region20
        $region19: #{tpu_custom_call.1} parent=11 // pred_region
          _
        $region20: #{tpu_custom_call.1} parent=11 // pred_fallthru
          _
        // Predicated region
        $region21: #{tpu_custom_call.1} parent=11 // pred_check
          %p229 = pneg %p109
        $region22: #{tpu_custom_call.1} parent=11 // pred_check_branch
          %231 = sbr.rel (%p229) target = $region24
        $region23: #{tpu_custom_call.1} parent=11 // pred_region
          _
        $region24: #{tpu_custom_call.1} parent=11 // pred_fallthru
          _
        // Predicated region
        $region25: #{tpu_custom_call.1} parent=11 // pred_check
          %p232 = pneg %p130
        $region26: #{tpu_custom_call.1} parent=11 // pred_check_branch
          %234 = sbr.rel (%p232) target = $region28
        $region27: #{tpu_custom_call.1} parent=11 // pred_region
          _
        $region28: #{tpu_custom_call.1} parent=11 // pred_fallthru
          _
        // Predicated region
        $region29: #{tpu_custom_call.1} parent=11 // pred_check
          %p235 = pneg %p151
        $region30: #{tpu_custom_call.1} parent=11 // pred_check_branch
          %237 = sbr.rel (%p235) target = $region32
        $region31: #{tpu_custom_call.1} parent=11 // pred_region
          _
        $region32: #{tpu_custom_call.1} parent=11 // pred_fallthru
          _
        // Predicated region
        $region33: #{tpu_custom_call.1} parent=11 // pred_check
          %p238 = pneg %p172
        $region34: #{tpu_custom_call.1} parent=11 // pred_check_branch
          %240 = sbr.rel (%p238) target = $region36
        $region35: #{tpu_custom_call.1} parent=11 // pred_region
          _
        $region36: #{tpu_custom_call.1} parent=11 // pred_fallthru
          _
      $region12: #{tpu_custom_call.1} parent=5 // pred_fallthru
        _
      %p241 = scmp.lt.s32.totalorder %s20, 2
      // Predicated region
      $region37: #{tpu_custom_call.1} parent=5 // pred_check
        %p242 = pneg %p241
      $region38: #{tpu_custom_call.1} parent=5 // pred_check_branch
        %244 = sbr.rel (%p242) target = $region40
      $region39: #{tpu_custom_call.1} parent=5 // pred_region
        // Predicated region
        $region41: #{tpu_custom_call.1} parent=39 // pred_check
          %p245 = pneg %p40
        $region42: #{tpu_custom_call.1} parent=39 // pred_check_branch
          %247 = sbr.rel (%p245) target = $region44
        $region43: #{tpu_custom_call.1} parent=39 // pred_region
          %s248 = sand.u32 %s30, 1
          %s249 = scalar_lea.sflag [#allocation3], %s248
          %s250 = sand.u32 %s30, 1
          %s251 = smul.addr %s250, 112
          %s252 = scalar_lea.vmem [#allocation2], %s251
          %s253 = smul.u32 2, %s20
          %s255 = ssub.s32 1792, 1792
          %256 = vsyncadd %s249, %s255
          %s257 = smul.addr %s253, 7
          %s258 = smul.addr %s257, 128
          %s259 = scalar_lea.hbm %s0, %s258
          %s260 = sshll.u32 %s252, 4
          %s261 = int_to_ptr.vmem [resolvable:$true] %s260
          %266 = dma.hbm_to_vmem [thread:$0]  %s259, 1792, %s261, %s249, 896, 896, 56
        $region44: #{tpu_custom_call.1} parent=39 // pred_fallthru
          _
      $region40: #{tpu_custom_call.1} parent=5 // pred_fallthru
        _
      %p267 = scmp.le.s32.totalorder 1, %s20
      %p268 = scmp.lt.s32.totalorder %s20, 3
      %p269 = pnand %p267, %p268
      %p270 = pneg %p269
      // Predicated region
      $region45: #{tpu_custom_call.1} parent=5 // pred_check
        _
      $region46: #{tpu_custom_call.1} parent=5 // pred_check_branch
        %272 = sbr.rel (%p269) target = $region48
      $region47: #{tpu_custom_call.1} parent=5 // pred_region
        %s273 = ssub.s32 %s20, 1
        %s274 = sand.u32 %s33, 1
        %s275 = scalar_lea.sflag [#allocation3], %s274
        %s276 = sand.u32 %s33, 1
        %s277 = smul.addr %s276, 112
        %s278 = scalar_lea.vmem [#allocation2], %s277
        // Predicated region
        $region49: #{tpu_custom_call.1} parent=47 // pred_check
          %p279 = pneg %p46
        $region50: #{tpu_custom_call.1} parent=47 // pred_check_branch
          %281 = sbr.rel (%p279) target = $region52
        $region51: #{tpu_custom_call.1} parent=47 // pred_region
          %282 = dma.done %s275, 1792
        $region52: #{tpu_custom_call.1} parent=47 // pred_fallthru
          _
        // Predicated region
        $region53: #{tpu_custom_call.1} parent=47 // pred_check
          %p283 = pneg %p67
        $region54: #{tpu_custom_call.1} parent=47 // pred_check_branch
          %285 = sbr.rel (%p283) target = $region56
        $region55: #{tpu_custom_call.1} parent=47 // pred_region
          %286 = dma.done [#allocation6], 6272
        $region56: #{tpu_custom_call.1} parent=47 // pred_fallthru
          _
        %s287 = sand.u32 %s33, 1
        %s288 = scalar_lea.sflag [#allocation3], %s287
        %s289 = sand.u32 %s33, 1
        %s290 = smul.addr %s289, 112
        %s291 = scalar_lea.vmem [#allocation2], %s290
        %p292 = pneg %p46
        %p293 = pneg %p43
        %p294 = pneg %p67
        %p295 = pneg %p64
        %p296 = pneg %p88
        %p297 = pneg %p85
        %p298 = pneg %p109
        %p299 = pneg %p106
        %p300 = pneg %p130
        %p301 = pneg %p127
        %p302 = pneg %p151
        %p303 = pneg %p148
        %p304 = pneg %p172
        %p305 = pneg %p169
        %p306 = pneg %p198
        %p307 = pneg %p195
        %s308 = sand.u32 %s185, 1
        %s309 = scalar_lea.sflag [#allocation4], %s308
        %s310 = sand.u32 %s185, 1
        %s311 = smul.addr %s310, 16
        %s312 = scalar_lea.vmem [#allocation7], %s311
        %s313 = smul.u32 2, %s25
        %s314 = smul.u32 2, %s25
        %v316 = vld [vmem:[%s278] sm:$0xff]
        %v317 = vld [vmem:[%s278 + $0x8] sm:$0xff]
        %v318 = vld [vmem:[%s278 + $0x10] sm:$0xff]
        %v319 = vld [vmem:[%s278 + $0x18] sm:$0xff]
        %v320 = vld [vmem:[%s278 + $0x20] sm:$0xff]
        %v321 = vld [vmem:[%s278 + $0x28] sm:$0xff]
        %v322 = vld [vmem:[%s278 + $0x30] sm:$0xff]
        %v323 = vld [vmem:[%s278 + $0x38] sm:$0xff]
        %v324 = vld [vmem:[%s278 + $0x40] sm:$0xff]
        %v325 = vld [vmem:[%s278 + $0x48] sm:$0xff]
        %v326 = vld [vmem:[%s278 + $0x50] sm:$0xff]
        %v327 = vld [vmem:[%s278 + $0x58] sm:$0xff]
        %v328 = vld [vmem:[%s278 + $0x60] sm:$0xff]
        %v329 = vld [vmem:[%s278 + $0x68] sm:$0xff]
        %v330 = vpack.c.bf16 %v323, %v316
        %v331 = vpack.c.bf16 %v324, %v317
        %v332 = vpack.c.bf16 %v325, %v318
        %v333 = vpack.c.bf16 %v326, %v319
        %v334 = vpack.c.bf16 %v327, %v320
        %v335 = vpack.c.bf16 %v328, %v321
        %v336 = vpack.c.bf16 %v329, %v322
        %v337 = vld [vmem:[#allocation5] sm:$0xf]
        %v338 = vld [vmem:[#allocation5 + $0x4] sm:$0xf]
        %v339 = vld [vmem:[#allocation5 + $0x8] sm:$0xf]
        %v340 = vld [vmem:[#allocation5 + $0xc] sm:$0xf]
        %v341 = vld [vmem:[#allocation5 + $0x10] sm:$0xf]
        %v342 = vld [vmem:[#allocation5 + $0x14] sm:$0xf]
        %v343 = vld [vmem:[#allocation5 + $0x18] sm:$0xf]
        %v344 = vld [vmem:[#allocation5 + $0x1c] sm:$0xf]
        %v345 = vld [vmem:[#allocation5 + $0x20] sm:$0xf]
        %v346 = vld [vmem:[#allocation5 + $0x24] sm:$0xf]
        %v347 = vld [vmem:[#allocation5 + $0x28] sm:$0xf]
        %v348 = vld [vmem:[#allocation5 + $0x2c] sm:$0xf]
        %v349 = vld [vmem:[#allocation5 + $0x30] sm:$0xf]
        %v350 = vld [vmem:[#allocation5 + $0x34] sm:$0xf]
        %v351 = vld [vmem:[#allocation5 + $0x38] sm:$0xf]
        %v352 = vld [vmem:[#allocation5 + $0x3c] sm:$0xf]
        %v353 = vld [vmem:[#allocation5 + $0x40] sm:$0xf]
        %v354 = vld [vmem:[#allocation5 + $0x44] sm:$0xf]
        %v355 = vld [vmem:[#allocation5 + $0x48] sm:$0xf]
        %v356 = vld [vmem:[#allocation5 + $0x4c] sm:$0xf]
        %v357 = vld [vmem:[#allocation5 + $0x50] sm:$0xf]
        %v358 = vld [vmem:[#allocation5 + $0x54] sm:$0xf]
        %v359 = vld [vmem:[#allocation5 + $0x58] sm:$0xf]
        %v360 = vld [vmem:[#allocation5 + $0x5c] sm:$0xf]
        %v361 = vld [vmem:[#allocation5 + $0x60] sm:$0xf]
        %v362 = vld [vmem:[#allocation5 + $0x64] sm:$0xf]
        %v363 = vld [vmem:[#allocation5 + $0x68] sm:$0xf]
        %v364 = vld [vmem:[#allocation5 + $0x6c] sm:$0xf]
        %v365 = vld [vmem:[#allocation5 + $0x70] sm:$0xf]
        %v366 = vld [vmem:[#allocation5 + $0x74] sm:$0xf]
        %v367 = vld [vmem:[#allocation5 + $0x78] sm:$0xf]
        %v368 = vld [vmem:[#allocation5 + $0x7c] sm:$0xf]
        %v369 = vld [vmem:[#allocation5 + $0x80] sm:$0xf]
        %v370 = vld [vmem:[#allocation5 + $0x84] sm:$0xf]
        %v371 = vld [vmem:[#allocation5 + $0x88] sm:$0xf]
        %v372 = vld [vmem:[#allocation5 + $0x8c] sm:$0xf]
        %v373 = vld [vmem:[#allocation5 + $0x90] sm:$0xf]
        %v374 = vld [vmem:[#allocation5 + $0x94] sm:$0xf]
        %v375 = vld [vmem:[#allocation5 + $0x98] sm:$0xf]
        %v376 = vld [vmem:[#allocation5 + $0x9c] sm:$0xf]
        %v377 = vld [vmem:[#allocation5 + $0xa0] sm:$0xf]
        %v378 = vld [vmem:[#allocation5 + $0xa4] sm:$0xf]
        %v379 = vld [vmem:[#allocation5 + $0xa8] sm:$0xf]
        %v380 = vld [vmem:[#allocation5 + $0xac] sm:$0xf]
        %v381 = vld [vmem:[#allocation5 + $0xb0] sm:$0xf]
        %v382 = vld [vmem:[#allocation5 + $0xb4] sm:$0xf]
        %v383 = vld [vmem:[#allocation5 + $0xb8] sm:$0xf]
        %v384 = vld [vmem:[#allocation5 + $0xbc] sm:$0xf]
        %v385 = vld [vmem:[#allocation5 + $0xc0] sm:$0xf]
        %v386 = vld [vmem:[#allocation5 + $0xc4] sm:$0xf]
        %v387 = vld [vmem:[#allocation5 + $0xc8] sm:$0xf]
        %v388 = vld [vmem:[#allocation5 + $0xcc] sm:$0xf]
        %v389 = vld [vmem:[#allocation5 + $0xd0] sm:$0xf]
        %v390 = vld [vmem:[#allocation5 + $0xd4] sm:$0xf]
        %v391 = vld [vmem:[#allocation5 + $0xd8] sm:$0xf]
        %v392 = vld [vmem:[#allocation5 + $0xdc] sm:$0xf]
        %v393 = vld [vmem:[#allocation5 + $0xe0] sm:$0xf]
        %v394 = vld [vmem:[#allocation5 + $0xe4] sm:$0xf]
        %v395 = vld [vmem:[#allocation5 + $0xe8] sm:$0xf]
        %v396 = vld [vmem:[#allocation5 + $0xec] sm:$0xf]
        %v397 = vld [vmem:[#allocation5 + $0xf0] sm:$0xf]
        %v398 = vld [vmem:[#allocation5 + $0xf4] sm:$0xf]
        %v399 = vld [vmem:[#allocation5 + $0xf8] sm:$0xf]
        %v400 = vld [vmem:[#allocation5 + $0xfc] sm:$0xf]
        %v401 = vld [vmem:[#allocation5 + $0x100] sm:$0xf]
        %v402 = vld [vmem:[#allocation5 + $0x104] sm:$0xf]
        %v403 = vld [vmem:[#allocation5 + $0x108] sm:$0xf]
        %v404 = vld [vmem:[#allocation5 + $0x10c] sm:$0xf]
        %v405 = vld [vmem:[#allocation5 + $0x110] sm:$0xf]
        %v406 = vld [vmem:[#allocation5 + $0x114] sm:$0xf]
        %v407 = vld [vmem:[#allocation5 + $0x118] sm:$0xf]
        %v408 = vld [vmem:[#allocation5 + $0x11c] sm:$0xf]
        %v409 = vld [vmem:[#allocation5 + $0x120] sm:$0xf]
        %v410 = vld [vmem:[#allocation5 + $0x124] sm:$0xf]
        %v411 = vld [vmem:[#allocation5 + $0x128] sm:$0xf]
        %v412 = vld [vmem:[#allocation5 + $0x12c] sm:$0xf]
        %v413 = vld [vmem:[#allocation5 + $0x130] sm:$0xf]
        %v414 = vld [vmem:[#allocation5 + $0x134] sm:$0xf]
        %v415 = vld [vmem:[#allocation5 + $0x138] sm:$0xf]
        %v416 = vld [vmem:[#allocation5 + $0x13c] sm:$0xf]
        %v417 = vld [vmem:[#allocation5 + $0x140] sm:$0xf]
        %v418 = vld [vmem:[#allocation5 + $0x144] sm:$0xf]
        %v419 = vld [vmem:[#allocation5 + $0x148] sm:$0xf]
        %v420 = vld [vmem:[#allocation5 + $0x14c] sm:$0xf]
        %v421 = vld [vmem:[#allocation5 + $0x150] sm:$0xf]
        %v422 = vld [vmem:[#allocation5 + $0x154] sm:$0xf]
        %v423 = vld [vmem:[#allocation5 + $0x158] sm:$0xf]
        %v424 = vld [vmem:[#allocation5 + $0x15c] sm:$0xf]
        %v425 = vld [vmem:[#allocation5 + $0x160] sm:$0xf]
        %v426 = vld [vmem:[#allocation5 + $0x164] sm:$0xf]
        %v427 = vld [vmem:[#allocation5 + $0x168] sm:$0xf]
        %v428 = vld [vmem:[#allocation5 + $0x16c] sm:$0xf]
        %v429 = vld [vmem:[#allocation5 + $0x170] sm:$0xf]
        %v430 = vld [vmem:[#allocation5 + $0x174] sm:$0xf]
        %v431 = vld [vmem:[#allocation5 + $0x178] sm:$0xf]
        %v432 = vld [vmem:[#allocation5 + $0x17c] sm:$0xf]
        %v433 = vld [vmem:[#allocation5 + $0x180] sm:$0xf]
        %v434 = vld [vmem:[#allocation5 + $0x184] sm:$0xf]
        %v435 = vld [vmem:[%s2] sm:$0x1]
        %v437 = vlaneseq
        %v438 = vshrl.u32 %v437, 7
        %v439 = vsub.s32 0, %v438
        %v440 = vrot.slane %v435, %v439
        %v540 = vunpack.c.l.b16 %v337
        %v541 = vunpack.c.l.b16 %v338
        %v542 = vunpack.c.l.b16 %v339
        %v543 = vunpack.c.l.b16 %v340
        %v544 = vunpack.c.l.b16 %v341
        %v545 = vunpack.c.l.b16 %v342
        %v546 = vunpack.c.l.b16 %v343
        %v547 = vunpack.c.l.b16 %v344
        %v548 = vunpack.c.l.b16 %v345
        %v549 = vunpack.c.l.b16 %v346
        %v550 = vunpack.c.l.b16 %v347
        %v551 = vunpack.c.l.b16 %v348
        %v552 = vunpack.c.l.b16 %v349
        %v553 = vunpack.c.l.b16 %v350
        %v554 = vunpack.c.l.b16 %v351
        %v555 = vunpack.c.l.b16 %v352
        %v556 = vunpack.c.l.b16 %v353
        %v557 = vunpack.c.l.b16 %v354
        %v558 = vunpack.c.l.b16 %v355
        %v559 = vunpack.c.l.b16 %v356
        %v560 = vunpack.c.l.b16 %v357
        %v561 = vunpack.c.l.b16 %v358
        %v562 = vunpack.c.l.b16 %v359
        %v563 = vunpack.c.l.b16 %v360
        %v564 = vunpack.c.l.b16 %v361
        %v565 = vunpack.c.l.b16 %v362
        %v566 = vunpack.c.l.b16 %v363
        %v567 = vunpack.c.l.b16 %v364
        %v568 = vunpack.c.l.b16 %v365
        %v569 = vunpack.c.l.b16 %v366
        %v570 = vunpack.c.l.b16 %v367
        %v571 = vunpack.c.l.b16 %v368
        %v572 = vunpack.c.l.b16 %v369
        %v573 = vunpack.c.l.b16 %v370
        %v574 = vunpack.c.l.b16 %v371
        %v575 = vunpack.c.l.b16 %v372
        %v576 = vunpack.c.l.b16 %v373
        %v577 = vunpack.c.l.b16 %v374
        %v578 = vunpack.c.l.b16 %v375
        %v579 = vunpack.c.l.b16 %v376
        %v580 = vunpack.c.l.b16 %v377
        %v581 = vunpack.c.l.b16 %v378
        %v582 = vunpack.c.l.b16 %v379
        %v583 = vunpack.c.l.b16 %v380
        %v584 = vunpack.c.l.b16 %v381
        %v585 = vunpack.c.l.b16 %v382
        %v586 = vunpack.c.l.b16 %v383
        %v587 = vunpack.c.l.b16 %v384
        %v588 = vunpack.c.l.b16 %v385
        %v589 = vunpack.c.l.b16 %v386
        %v590 = vunpack.c.l.b16 %v387
        %v591 = vunpack.c.l.b16 %v388
        %v592 = vunpack.c.l.b16 %v389
        %v593 = vunpack.c.l.b16 %v390
        %v594 = vunpack.c.l.b16 %v391
        %v595 = vunpack.c.l.b16 %v392
        %v596 = vunpack.c.l.b16 %v393
        %v597 = vunpack.c.l.b16 %v394
        %v598 = vunpack.c.l.b16 %v395
        %v599 = vunpack.c.l.b16 %v396
        %v600 = vunpack.c.l.b16 %v397
        %v601 = vunpack.c.l.b16 %v398
        %v602 = vunpack.c.l.b16 %v399
        %v603 = vunpack.c.l.b16 %v400
        %v604 = vunpack.c.l.b16 %v401
        %v605 = vunpack.c.l.b16 %v402
        %v606 = vunpack.c.l.b16 %v403
        %v607 = vunpack.c.l.b16 %v404
        %v608 = vunpack.c.l.b16 %v405
        %v609 = vunpack.c.l.b16 %v406
        %v610 = vunpack.c.l.b16 %v407
        %v611 = vunpack.c.l.b16 %v408
        %v612 = vunpack.c.l.b16 %v409
        %v613 = vunpack.c.l.b16 %v410
        %v614 = vunpack.c.l.b16 %v411
        %v615 = vunpack.c.l.b16 %v412
        %v616 = vunpack.c.l.b16 %v413
        %v617 = vunpack.c.l.b16 %v414
        %v618 = vunpack.c.l.b16 %v415
        %v619 = vunpack.c.l.b16 %v416
        %v620 = vunpack.c.l.b16 %v417
        %v621 = vunpack.c.l.b16 %v418
        %v622 = vunpack.c.l.b16 %v419
        %v623 = vunpack.c.l.b16 %v420
        %v624 = vunpack.c.l.b16 %v421
        %v625 = vunpack.c.l.b16 %v422
        %v626 = vunpack.c.l.b16 %v423
        %v627 = vunpack.c.l.b16 %v424
        %v628 = vunpack.c.l.b16 %v425
        %v629 = vunpack.c.l.b16 %v426
        %v630 = vunpack.c.l.b16 %v427
        %v631 = vunpack.c.l.b16 %v428
        %v632 = vunpack.c.l.b16 %v429
        %v633 = vunpack.c.l.b16 %v430
        %v634 = vunpack.c.l.b16 %v431
        %v635 = vunpack.c.l.b16 %v432
        %v636 = vunpack.c.l.b16 %v433
        %v637 = vunpack.c.l.b16 %v434
        %v638 = vpack.c.b16 %v541, %v540
        %v639 = vpack.c.b16 %v543, %v542
        %v640 = vpack.c.b16 %v545, %v544
        %v641 = vpack.c.b16 %v547, %v546
        %v642 = vpack.c.b16 %v549, %v548
        %v643 = vpack.c.b16 %v551, %v550
        %v644 = vpack.c.b16 %v553, %v552
        %v645 = vpack.c.b16 %v555, %v554
        %v646 = vpack.c.b16 %v557, %v556
        %v647 = vpack.c.b16 %v559, %v558
        %v648 = vpack.c.b16 %v561, %v560
        %v649 = vpack.c.b16 %v563, %v562
        %v650 = vpack.c.b16 %v565, %v564
        %v651 = vpack.c.b16 %v567, %v566
        %v652 = vpack.c.b16 %v569, %v568
        %v653 = vpack.c.b16 %v571, %v570
        %v654 = vpack.c.b16 %v573, %v572
        %v655 = vpack.c.b16 %v575, %v574
        %v656 = vpack.c.b16 %v577, %v576
        %v657 = vpack.c.b16 %v579, %v578
        %v658 = vpack.c.b16 %v581, %v580
        %v659 = vpack.c.b16 %v583, %v582
        %v660 = vpack.c.b16 %v585, %v584
        %v661 = vpack.c.b16 %v587, %v586
        %v662 = vpack.c.b16 %v589, %v588
        %v663 = vpack.c.b16 %v591, %v590
        %v664 = vpack.c.b16 %v593, %v592
        %v665 = vpack.c.b16 %v595, %v594
        %v666 = vpack.c.b16 %v597, %v596
        %v667 = vpack.c.b16 %v599, %v598
        %v668 = vpack.c.b16 %v601, %v600
        %v669 = vpack.c.b16 %v603, %v602
        %v670 = vpack.c.b16 %v605, %v604
        %v671 = vpack.c.b16 %v607, %v606
        %v672 = vpack.c.b16 %v609, %v608
        %v673 = vpack.c.b16 %v611, %v610
        %v674 = vpack.c.b16 %v613, %v612
        %v675 = vpack.c.b16 %v615, %v614
        %v676 = vpack.c.b16 %v617, %v616
        %v677 = vpack.c.b16 %v619, %v618
        %v678 = vpack.c.b16 %v621, %v620
        %v679 = vpack.c.b16 %v623, %v622
        %v680 = vpack.c.b16 %v625, %v624
        %v681 = vpack.c.b16 %v627, %v626
        %v682 = vpack.c.b16 %v629, %v628
        %v683 = vpack.c.b16 %v631, %v630
        %v684 = vpack.c.b16 %v633, %v632
        %v685 = vpack.c.b16 %v635, %v634
        %v686 = vpack.c.b16 %v637, %v636
        %vm736 = vcmask 130048
        %v738 = vsel %vm736, %v336, 0
        %740 = vmatprep.subr.bf16.mxu0 0
        %741 = vmatpush1.bf16.msra.mxu0 %v645
        %742 = vmatprep.subr.bf16.mxu0 0
        %743 = vmatpush1.bf16.msra.mxu0 %v644
        %744 = vmatprep.subr.bf16.mxu0 0
        %745 = vmatpush1.bf16.msra.mxu0 %v643
        %746 = vmatprep.subr.bf16.mxu0 0
        %747 = vmatpush1.bf16.msra.mxu0 %v642
        %748 = vmatprep.subr.bf16.mxu0 0
        %749 = vmatpush1.bf16.msra.mxu0 %v641
        %750 = vmatprep.subr.bf16.mxu0 0
        %751 = vmatpush1.bf16.msra.mxu0 %v640
        %752 = vmatprep.subr.bf16.mxu0 0
        %753 = vmatpush1.bf16.msra.mxu0 %v639
        %754 = vmatprep.subr.bf16.mxu0 0
        %755 = vmatpush1.bf16.msra.mxu0 %v638
        %756 = vmatprep.subr.bf16.mxu0 0
        %757 = vmatpush2.bf16.msra.mxu0 %v653
        %758 = vmatprep.subr.bf16.mxu0 0
        %759 = vmatpush2.bf16.msra.mxu0 %v652
        %760 = vmatprep.subr.bf16.mxu0 0
        %761 = vmatpush2.bf16.msra.mxu0 %v651
        %762 = vmatprep.subr.bf16.mxu0 0
        %763 = vmatpush2.bf16.msra.mxu0 %v650
        %764 = vmatprep.subr.bf16.mxu0 0
        %765 = vmatpush2.bf16.msra.mxu0 %v649
        %766 = vmatprep.subr.bf16.mxu0 0
        %767 = vmatpush2.bf16.msra.mxu0 %v648
        %768 = vmatprep.subr.bf16.mxu0 0
        %769 = vmatpush2.bf16.msra.mxu0 %v647
        %770 = vmatprep.subr.bf16.mxu0 0
        %771 = vmatpush2.bf16.msra.mxu0 %v646
        %772 = vmatprep.mubr.bf16.mxu0 %v331
        %773 = vmatmul.mubr.bf16.gmra.mxu0 %v330
        %v774 = vpop.f32.mrf.mxu0
        %v775 = vadd.f32 %v440, %v774
        %v776 = vpop.f32.mrf.mxu0
        %v777 = vpop.f32.mrf.mxu0
        %v778 = vadd.f32 %v440, %v777
        %v779 = vpop.f32.mrf.mxu0
        %780 = vdwg.mxu0
        %781 = vmatprep.subr.bf16.mxu0 0
        %782 = vmatpush1.bf16.msra.mxu0 %v661
        %783 = vmatprep.subr.bf16.mxu0 0
        %784 = vmatpush1.bf16.msra.mxu0 %v660
        %785 = vmatprep.subr.bf16.mxu0 0
        %786 = vmatpush1.bf16.msra.mxu0 %v659
        %787 = vmatprep.subr.bf16.mxu0 0
        %788 = vmatpush1.bf16.msra.mxu0 %v658
        %789 = vmatprep.subr.bf16.mxu0 0
        %790 = vmatpush1.bf16.msra.mxu0 %v657
        %791 = vmatprep.subr.bf16.mxu0 0
        %792 = vmatpush1.bf16.msra.mxu0 %v656
        %793 = vmatprep.subr.bf16.mxu0 0
        %794 = vmatpush1.bf16.msra.mxu0 %v655
        %795 = vmatprep.subr.bf16.mxu0 0
        %796 = vmatpush1.bf16.msra.mxu0 %v654
        %797 = vmatprep.subr.bf16.mxu0 0
        %798 = vmatpush2.bf16.msra.mxu0 %v669
        %799 = vmatprep.subr.bf16.mxu0 0
        %800 = vmatpush2.bf16.msra.mxu0 %v668
        %801 = vmatprep.subr.bf16.mxu0 0
        %802 = vmatpush2.bf16.msra.mxu0 %v667
        %803 = vmatprep.subr.bf16.mxu0 0
        %804 = vmatpush2.bf16.msra.mxu0 %v666
        %805 = vmatprep.subr.bf16.mxu0 0
        %806 = vmatpush2.bf16.msra.mxu0 %v665
        %807 = vmatprep.subr.bf16.mxu0 0
        %808 = vmatpush2.bf16.msra.mxu0 %v664
        %809 = vmatprep.subr.bf16.mxu0 0
        %810 = vmatpush2.bf16.msra.mxu0 %v663
        %811 = vmatprep.subr.bf16.mxu0 0
        %812 = vmatpush2.bf16.msra.mxu0 %v662
        %813 = vmatprep.mubr.bf16.mxu0 %v333
        %814 = vmatmul.mubr.bf16.gmra.mxu0 %v332
        %v815 = vpop.f32.mrf.mxu0
        %v816 = vadd.f32 %v775, %v815
        %v817 = vpop.f32.mrf.mxu0
        %v818 = vpop.f32.mrf.mxu0
        %v819 = vadd.f32 %v778, %v818
        %v820 = vpop.f32.mrf.mxu0
        %821 = vdwg.mxu0
        %822 = vmatprep.subr.bf16.mxu0 0
        %823 = vmatpush1.bf16.msra.mxu0 %v677
        %824 = vmatprep.subr.bf16.mxu0 0
        %825 = vmatpush1.bf16.msra.mxu0 %v676
        %826 = vmatprep.subr.bf16.mxu0 0
        %827 = vmatpush1.bf16.msra.mxu0 %v675
        %828 = vmatprep.subr.bf16.mxu0 0
        %829 = vmatpush1.bf16.msra.mxu0 %v674
        %830 = vmatprep.subr.bf16.mxu0 0
        %831 = vmatpush1.bf16.msra.mxu0 %v673
        %832 = vmatprep.subr.bf16.mxu0 0
        %833 = vmatpush1.bf16.msra.mxu0 %v672
        %834 = vmatprep.subr.bf16.mxu0 0
        %835 = vmatpush1.bf16.msra.mxu0 %v671
        %836 = vmatprep.subr.bf16.mxu0 0
        %837 = vmatpush1.bf16.msra.mxu0 %v670
        %838 = vmatprep.subr.bf16.mxu0 0
        %839 = vmatpush2.bf16.msra.mxu0 %v685
        %840 = vmatprep.subr.bf16.mxu0 0
        %841 = vmatpush2.bf16.msra.mxu0 %v684
        %842 = vmatprep.subr.bf16.mxu0 0
        %843 = vmatpush2.bf16.msra.mxu0 %v683
        %844 = vmatprep.subr.bf16.mxu0 0
        %845 = vmatpush2.bf16.msra.mxu0 %v682
        %846 = vmatprep.subr.bf16.mxu0 0
        %847 = vmatpush2.bf16.msra.mxu0 %v681
        %848 = vmatprep.subr.bf16.mxu0 0
        %849 = vmatpush2.bf16.msra.mxu0 %v680
        %850 = vmatprep.subr.bf16.mxu0 0
        %851 = vmatpush2.bf16.msra.mxu0 %v679
        %852 = vmatprep.subr.bf16.mxu0 0
        %853 = vmatpush2.bf16.msra.mxu0 %v678
        %854 = vmatprep.mubr.bf16.mxu0 %v335
        %855 = vmatmul.mubr.bf16.gmra.mxu0 %v334
        %v856 = vpop.f32.mrf.mxu0
        %v857 = vadd.f32 %v816, %v856
        %v858 = vpop.f32.mrf.mxu0
        %v859 = vpop.f32.mrf.mxu0
        %v860 = vadd.f32 %v819, %v859
        %v861 = vpop.f32.mrf.mxu0
        %862 = vdwg.mxu0
        %863 = vmatprep.subr.bf16.mxu0 0
        %864 = vmatpush1.bf16.msra.mxu0 0
        %865 = vmatprep.subr.bf16.mxu0 0
        %866 = vmatpush1.bf16.msra.mxu0 0
        %867 = vmatprep.subr.bf16.mxu0 0
        %868 = vmatpush1.bf16.msra.mxu0 0
        %869 = vmatprep.subr.bf16.mxu0 0
        %870 = vmatpush1.bf16.msra.mxu0 0
        %871 = vmatprep.subr.bf16.mxu0 0
        %872 = vmatpush1.bf16.msra.mxu0 0
        %873 = vmatprep.subr.bf16.mxu0 0
        %874 = vmatpush1.bf16.msra.mxu0 0
        %875 = vmatprep.subr.bf16.mxu0 0
        %876 = vmatpush1.bf16.msra.mxu0 0
        %877 = vmatprep.subr.bf16.mxu0 0
        %878 = vmatpush1.bf16.msra.mxu0 %v686
        %879 = vmatprep.subr.bf16.mxu0 0
        %880 = vmatpush2.bf16.msra.mxu0 0
        %881 = vmatprep.subr.bf16.mxu0 0
        %882 = vmatpush2.bf16.msra.mxu0 0
        %883 = vmatprep.subr.bf16.mxu0 0
        %884 = vmatpush2.bf16.msra.mxu0 0
        %885 = vmatprep.subr.bf16.mxu0 0
        %886 = vmatpush2.bf16.msra.mxu0 0
        %887 = vmatprep.subr.bf16.mxu0 0
        %888 = vmatpush2.bf16.msra.mxu0 0
        %889 = vmatprep.subr.bf16.mxu0 0
        %890 = vmatpush2.bf16.msra.mxu0 0
        %891 = vmatprep.subr.bf16.mxu0 0
        %892 = vmatpush2.bf16.msra.mxu0 0
        %893 = vmatprep.subr.bf16.mxu0 0
        %894 = vmatpush2.bf16.msra.mxu0 0
        %895 = vmatprep.mubr.bf16.mxu0 0
        %896 = vmatmul.mubr.bf16.gmra.mxu0 %v738
        %v897 = vpop.f32.mrf.mxu0
        %v898 = vadd.f32 %v857, %v897
        %v899 = vpop.f32.mrf.mxu0
        %v900 = vpop.f32.mrf.mxu0
        %v901 = vadd.f32 %v860, %v900
        %v902 = vpop.f32.mrf.mxu0
        %903 = vdwg.mxu0
        %v904 = vmax.f32 %v898, 0.0
        %v905 = vmax.f32 %v901, 0.0
        %v906 = vpack.c.bf16 %v905, %v904
        %v907 = vld [vmem:[%s3] sm:$0xf]
        %v908 = vld [vmem:[%s3 + $0x4] sm:$0xf]
        %v909 = vld [vmem:[%s3 + $0x8] sm:$0xf]
        %v910 = vld [vmem:[%s3 + $0xc] sm:$0xf]
        %v911 = vld [vmem:[%s3 + $0x10] sm:$0xf]
        %v912 = vld [vmem:[%s3 + $0x14] sm:$0xf]
        %v913 = vld [vmem:[%s3 + $0x18] sm:$0xf]
        %v914 = vld [vmem:[%s3 + $0x1c] sm:$0xf]
        %v915 = vld [vmem:[%s3 + $0x20] sm:$0xf]
        %v916 = vld [vmem:[%s3 + $0x24] sm:$0xf]
        %v917 = vld [vmem:[%s3 + $0x28] sm:$0xf]
        %v918 = vld [vmem:[%s3 + $0x2c] sm:$0xf]
        %v919 = vld [vmem:[%s3 + $0x30] sm:$0xf]
        %v920 = vld [vmem:[%s3 + $0x34] sm:$0xf]
        %v921 = vld [vmem:[%s3 + $0x38] sm:$0xf]
        %v922 = vld [vmem:[%s3 + $0x3c] sm:$0xf]
        %v923 = vld [vmem:[%s4] sm:$0x1]
        %v925 = vlaneseq
        %v926 = vshrl.u32 %v925, 7
        %v927 = vsub.s32 0, %v926
        %v928 = vrot.slane %v923, %v927
        %v946 = vunpack.c.l.b16 %v907
        %v947 = vunpack.c.l.b16 %v908
        %v948 = vunpack.c.l.b16 %v909
        %v949 = vunpack.c.l.b16 %v910
        %v950 = vunpack.c.l.b16 %v911
        %v951 = vunpack.c.l.b16 %v912
        %v952 = vunpack.c.l.b16 %v913
        %v953 = vunpack.c.l.b16 %v914
        %v954 = vunpack.c.l.b16 %v915
        %v955 = vunpack.c.l.b16 %v916
        %v956 = vunpack.c.l.b16 %v917
        %v957 = vunpack.c.l.b16 %v918
        %v958 = vunpack.c.l.b16 %v919
        %v959 = vunpack.c.l.b16 %v920
        %v960 = vunpack.c.l.b16 %v921
        %v961 = vunpack.c.l.b16 %v922
        %v962 = vpack.c.b16 %v947, %v946
        %v963 = vpack.c.b16 %v949, %v948
        %v964 = vpack.c.b16 %v951, %v950
        %v965 = vpack.c.b16 %v953, %v952
        %v966 = vpack.c.b16 %v955, %v954
        %v967 = vpack.c.b16 %v957, %v956
        %v968 = vpack.c.b16 %v959, %v958
        %v969 = vpack.c.b16 %v961, %v960
        %978 = vmatprep.subr.bf16.mxu0 0
        %979 = vmatpush1.bf16.msra.mxu0 %v969
        %980 = vmatprep.subr.bf16.mxu0 0
        %981 = vmatpush1.bf16.msra.mxu0 %v968
        %982 = vmatprep.subr.bf16.mxu0 0
        %983 = vmatpush1.bf16.msra.mxu0 %v967
        %984 = vmatprep.subr.bf16.mxu0 0
        %985 = vmatpush1.bf16.msra.mxu0 %v966
        %986 = vmatprep.subr.bf16.mxu0 0
        %987 = vmatpush1.bf16.msra.mxu0 %v965
        %988 = vmatprep.subr.bf16.mxu0 0
        %989 = vmatpush1.bf16.msra.mxu0 %v964
        %990 = vmatprep.subr.bf16.mxu0 0
        %991 = vmatpush1.bf16.msra.mxu0 %v963
        %992 = vmatprep.subr.bf16.mxu0 0
        %993 = vmatpush1.bf16.msra.mxu0 %v962
        %994 = vmatprep.subr.bf16.mxu0 0
        %995 = vmatpush2.bf16.msra.mxu0 0
        %996 = vmatprep.subr.bf16.mxu0 0
        %997 = vmatpush2.bf16.msra.mxu0 0
        %998 = vmatprep.subr.bf16.mxu0 0
        %999 = vmatpush2.bf16.msra.mxu0 0
        %1000 = vmatprep.subr.bf16.mxu0 0
        %1001 = vmatpush2.bf16.msra.mxu0 0
        %1002 = vmatprep.subr.bf16.mxu0 0
        %1003 = vmatpush2.bf16.msra.mxu0 0
        %1004 = vmatprep.subr.bf16.mxu0 0
        %1005 = vmatpush2.bf16.msra.mxu0 0
        %1006 = vmatprep.subr.bf16.mxu0 0
        %1007 = vmatpush2.bf16.msra.mxu0 0
        %1008 = vmatprep.subr.bf16.mxu0 0
        %1009 = vmatpush2.bf16.msra.mxu0 0
        %1010 = vmatprep.mubr.bf16.mxu0 0
        %1011 = vmatmul.mubr.bf16.gmra.mxu0 %v906
        %v1012 = vpop.f32.mrf.mxu0
        %v1013 = vadd.f32 %v928, %v1012
        %v1014 = vpop.f32.mrf.mxu0
        %v1015 = vpop.f32.mrf.mxu0
        %v1016 = vadd.f32 %v928, %v1015
        %v1017 = vpop.f32.mrf.mxu0
        %1018 = vdwg.mxu0
        %v1019 = vmax.f32 %v1013, 0.0
        %v1020 = vmax.f32 %v1016, 0.0
        %v1021 = vpack.c.bf16 %v1020, %v1019
        %v1022 = vld [vmem:[%s5] sm:$0xf]
        %v1023 = vld [vmem:[%s5 + $0x4] sm:$0xf]
        %v1024 = vld [vmem:[%s5 + $0x8] sm:$0xf]
        %v1025 = vld [vmem:[%s5 + $0xc] sm:$0xf]
        %v1026 = vld [vmem:[%s5 + $0x10] sm:$0xf]
        %v1027 = vld [vmem:[%s5 + $0x14] sm:$0xf]
        %v1028 = vld [vmem:[%s5 + $0x18] sm:$0xf]
        %v1029 = vld [vmem:[%s5 + $0x1c] sm:$0xf]
        %v1030 = vld [vmem:[%s6] sm:$0x1]
        %v1032 = vlaneseq
        %v1033 = vshrl.u32 %v1032, 7
        %v1034 = vsub.s32 0, %v1033
        %v1035 = vrot.slane %v1030, %v1034
        %v1045 = vunpack.c.l.b16 %v1022
        %v1046 = vunpack.c.l.b16 %v1023
        %v1047 = vunpack.c.l.b16 %v1024
        %v1048 = vunpack.c.l.b16 %v1025
        %v1049 = vunpack.c.l.b16 %v1026
        %v1050 = vunpack.c.l.b16 %v1027
        %v1051 = vunpack.c.l.b16 %v1028
        %v1052 = vunpack.c.l.b16 %v1029
        %v1053 = vpack.c.b16 %v1046, %v1045
        %v1054 = vpack.c.b16 %v1048, %v1047
        %v1055 = vpack.c.b16 %v1050, %v1049
        %v1056 = vpack.c.b16 %v1052, %v1051
        %vm1061 = vcmask 523264
        %v1063 = vsel %vm1061, %v1021, 0
        %1065 = vmatprep.subr.bf16.mxu0 0
        %1066 = vmatpush1.bf16.msra.mxu0 0
        %1067 = vmatprep.subr.bf16.mxu0 0
        %1068 = vmatpush1.bf16.msra.mxu0 0
        %1069 = vmatprep.subr.bf16.mxu0 0
        %1070 = vmatpush1.bf16.msra.mxu0 0
        %1071 = vmatprep.subr.bf16.mxu0 0
        %1072 = vmatpush1.bf16.msra.mxu0 0
        %1073 = vmatprep.subr.bf16.mxu0 0
        %1074 = vmatpush1.bf16.msra.mxu0 %v1056
        %1075 = vmatprep.subr.bf16.mxu0 0
        %1076 = vmatpush1.bf16.msra.mxu0 %v1055
        %1077 = vmatprep.subr.bf16.mxu0 0
        %1078 = vmatpush1.bf16.msra.mxu0 %v1054
        %1079 = vmatprep.subr.bf16.mxu0 0
        %1080 = vmatpush1.bf16.msra.mxu0 %v1053
        %1081 = vmatprep.subr.bf16.mxu0 0
        %1082 = vmatpush2.bf16.msra.mxu0 0
        %1083 = vmatprep.subr.bf16.mxu0 0
        %1084 = vmatpush2.bf16.msra.mxu0 0
        %1085 = vmatprep.subr.bf16.mxu0 0
        %1086 = vmatpush2.bf16.msra.mxu0 0
        %1087 = vmatprep.subr.bf16.mxu0 0
        %1088 = vmatpush2.bf16.msra.mxu0 0
        %1089 = vmatprep.subr.bf16.mxu0 0
        %1090 = vmatpush2.bf16.msra.mxu0 0
        %1091 = vmatprep.subr.bf16.mxu0 0
        %1092 = vmatpush2.bf16.msra.mxu0 0
        %1093 = vmatprep.subr.bf16.mxu0 0
        %1094 = vmatpush2.bf16.msra.mxu0 0
        %1095 = vmatprep.subr.bf16.mxu0 0
        %1096 = vmatpush2.bf16.msra.mxu0 0
        %1097 = vmatprep.mubr.bf16.mxu0 0
        %1098 = vmatmul.mubr.bf16.gmra.mxu0 %v1063
        %v1099 = vpop.f32.mrf.mxu0
        %v1100 = vadd.f32 %v1035, %v1099
        %v1101 = vpop.f32.mrf.mxu0
        %v1102 = vpop.f32.mrf.mxu0
        %v1103 = vadd.f32 %v1035, %v1102
        %v1104 = vpop.f32.mrf.mxu0
        %1105 = vdwg.mxu0
        %1106 = vst [vmem:[%s312] sm:$0xff] %v1100
        %1107 = vst [vmem:[%s312 + $0x8] sm:$0xff] %v1103
        %s1108 = sand.u32 %s185, 1
        %s1109 = scalar_lea.sflag [#allocation4], %s1108
        %s1110 = sand.u32 %s185, 1
        %s1111 = smul.addr %s1110, 16
        %s1112 = scalar_lea.vmem [#allocation7], %s1111
        // Predicated region
        $region57: #{tpu_custom_call.1} parent=47 // pred_check
          %p1113 = pneg %p195
        $region58: #{tpu_custom_call.1} parent=47 // pred_check_branch
          %1115 = sbr.rel (%p1113) target = $region60
        $region59: #{tpu_custom_call.1} parent=47 // pred_region
          %s1116 = smul.u32 2, %s25
          %s1118 = ssub.s32 256, 256
          %1119 = vsyncadd %s1109, %s1118
          %s1120 = smul.addr %s1116, 128
          %s1121 = scalar_lea.hbm %s7, %s1120
          %s1122 = sshll.u32 %s1112, 4
          %s1123 = int_to_ptr.vmem [resolvable:$true] %s1122
          %1128 = dma.vmem_to_hbm [thread:$0]  %s1123, 256, %s1121, %s1109, 128, 128, 8
        $region60: #{tpu_custom_call.1} parent=47 // pred_fallthru
          _
      $region48: #{tpu_custom_call.1} parent=5 // pred_fallthru
        _
      %p1129 = scmp.le.s32.totalorder 2, %s20
      // Predicated region
      $region61: #{tpu_custom_call.1} parent=5 // pred_check
        %p1130 = pneg %p1129
      $region62: #{tpu_custom_call.1} parent=5 // pred_check_branch
        %1132 = sbr.rel (%p1130) target = $region64
      $region63: #{tpu_custom_call.1} parent=5 // pred_region
        %s1133 = ssub.s32 %s20, 2
        // Predicated region
        $region65: #{tpu_custom_call.1} parent=63 // pred_check
          %p1134 = pneg %p201
        $region66: #{tpu_custom_call.1} parent=63 // pred_check_branch
          %1136 = sbr.rel (%p1134) target = $region68
        $region67: #{tpu_custom_call.1} parent=63 // pred_region
          %s1137 = sand.u32 %s186, 1
          %s1138 = scalar_lea.sflag [#allocation4], %s1137
          %s1139 = sand.u32 %s186, 1
          %s1140 = smul.addr %s1139, 16
          %s1141 = scalar_lea.vmem [#allocation7], %s1140
          %1142 = dma.done %s1138, 256
        $region68: #{tpu_custom_call.1} parent=63 // pred_fallthru
          _
      $region64: #{tpu_custom_call.1} parent=5 // pred_fallthru
        _
    $region6: #{tpu_custom_call.1} parent=1 // loop_footer
      %s24 = sadd.s32 1, %s20
    $region7: #{tpu_custom_call.1} parent=1 // loop_footer_branch
      %19 = sbr.rel target = $region3
    $region8: #{tpu_custom_call.1} parent=1 // loop_exit
      _
    %1143 = vsyncpa [#allocation3], 1
    %s1144 = scalar_lea.sflag [#allocation3], 1
    %1145 = vsyncpa %s1144, 1
    %1146 = vsyncpa [#allocation6], 1
    %1147 = vsyncpa [#allocation4], 1
    %s1148 = scalar_lea.sflag [#allocation4], 1
    %1149 = vsyncpa %s1148, 1

</llo_original>
